<compile_context>
chip_gen: v5e
topology: v5e:2x2
jax: 0.10.0
libtpu: 0.0.40
codegen_flags: <defaults>
</compile_context>

<pallas_src>
import functools

import jax
import jax.numpy as jnp
from jax import lax
from jax.experimental import pallas as pl
from jax.experimental.pallas import tpu as pltpu  # noqa: F401  (TPU backend)


def loss3_kernel(x_ref, y_ref, o_ref, *, k):
    x = x_ref[...].astype(jnp.float32)                     # (B, C) f32
    y = y_ref[...]                                         # (B, 1) int32
    B, C = x.shape

    col = lax.broadcasted_iota(jnp.int32, (B, C), 1)       # lane (class) indices
    is_label = col == y                                    # exactly one True per row

    # ones_like(x).scatter(-1, y, 0): add 1.0 everywhere except the label column.
    bumped = x + jnp.where(is_label, 0.0, 1.0)

    # s_y[i] = x[i, y[i]]  -- hoisted ahead of the k-loop (depends only on x /
    # is_label) so its XLU reduce latency overlaps the loop instead of the tail.
    s_y = jnp.sum(jnp.where(is_label, x, 0.0), axis=-1, keepdims=True)     # (B, 1)

    # Sublane->lane relayout of s_y: s_y_cols[a, b] = s_y[b], done ONCE via a
    # K=1 MXU outer product before the loop so MXU fill/drain hides under the
    # XLU-bound top-k loop.  (A vxpose transpose is the alternative; at B=8
    # both are a handful of cycles and this is the proven-lowering path.)
    ones_b1 = jnp.ones((B, 1), jnp.float32)
    s_y_cols = lax.dot_general(ones_b1, s_y, (((1,), (1,)), ((), ())),
                               preferred_element_type=jnp.float32)         # (B, B)

    # Top-k via k iterative (row-max, mask-first-occurrence) steps.  The
    # multiset of the k largest values is tie-break independent, so clamping
    # each of them individually matches torch.sort(descending)[:, :k] exactly.
    # TODO(synk): NaN logits follow jnp.max tie semantics, not torch.sort's.
    vals = bumped
    acc_bb = jnp.zeros((B, B), jnp.float32)
    for m in range(k):                                     # k is small & static: unrolled
        mv = jnp.max(vals, axis=-1, keepdims=True)         # (B, 1): m-th largest per row
        # PyTorch: ret[i, j] = sum_m relu(sorted[j, m] - s_y[i]).  Here
        # acc_bb[a, b] = sum_m relu(sorted[a, m] - s_y[b]) = ret[b, a], i.e. a
        # transposed layout (mv along sublanes, s_y along lanes) -- identical
        # under the final all-element mean, and it avoids any in-loop relayout.
        acc_bb = acc_bb + jnp.maximum(mv - s_y_cols, 0.0)
        if m + 1 < k:                                      # skip dead mask work on the last iter
            is_max = vals == mv
            first_idx = jnp.min(jnp.where(is_max, col, C), axis=-1, keepdims=True)
            vals = jnp.where(col == first_idx, -jnp.inf, vals)   # -inf: no collision with finite logits

    row_sum = jnp.sum(acc_bb, axis=-1, keepdims=True)      # (B, 1) lane reduce
    tot = jnp.sum(row_sum, axis=0, keepdims=True)          # (1, 1) sublane reduce
    o_ref[...] = tot * (1.0 / (B * B * k))                 # mean(ret / k)


def loss3(x, y, k):
    B, C = x.shape
    assert 1 <= k <= C, f"k={k} must satisfy 1 <= k <= num_classes={C}"
    y2d = y.astype(jnp.int32).reshape(B, 1)
    out = pl.pallas_call(
        functools.partial(loss3_kernel, k=k),
        out_shape=jax.ShapeDtypeStruct((1, 1), jnp.float32),
        grid=(1,),
        in_specs=[pl.BlockSpec((B, C), lambda i: (0, 0)),
                  pl.BlockSpec((B, 1), lambda i: (0, 0))],
        out_specs=pl.BlockSpec((1, 1), lambda i: (0, 0)),
        compiler_params=pltpu.CompilerParams(
            dimension_semantics=("arbitrary",)),
    )(x, y2d)
    return out[0, 0]


def loss3_ref(x, y, k):
    """Pure-JAX reference mirroring the PyTorch forward (incl. the (B,B) broadcast)."""
    B, _ = x.shape
    one_no_y = jnp.ones_like(x).at[jnp.arange(B), y].set(0.0)
    sorted_data = -jnp.sort(-(x + one_no_y), axis=-1)
    s_y = x[jnp.arange(B), y][:, None]                     # (B, 1)
    ret = jnp.maximum(sorted_data[:, 0] - s_y, 0.0)        # (B,) - (B,1) -> (B,B)
    for m in range(1, k):
        ret = ret + jnp.maximum(sorted_data[:, m] - s_y, 0.0)
    return jnp.mean(ret / k)


if __name__ == "__main__":
    key = jax.random.PRNGKey(0)
    B, C, k = 8, 32, 3                                     # Loss3(k=3)
    kx, ky = jax.random.split(key)
    x = jax.random.normal(kx, (B, C), dtype=jnp.float32)
    y = jax.random.randint(ky, (B,), 0, C, dtype=jnp.int32)

    out = loss3(x, y, k)
    jax.block_until_ready(out)

    ref = loss3_ref(x, y, k)
    assert jnp.allclose(out, ref, atol=1e-5, rtol=1e-5), (out, ref)
    print("KERNEL_OK")
</pallas_src>

<mosaic_0001>
module attributes {stable_mosaic.version = 11 : i64} {
  func.func @loss3_kernel(%arg0: i32, %arg1: memref<8x32xf32, #tpu.memory_space<vmem>>, %arg2: memref<8x1xi32, #tpu.memory_space<vmem>>, %arg3: memref<1x1xf32, #tpu.memory_space<vmem>>) attributes {dimension_semantics = [#tpu.dimension_semantics<arbitrary>], iteration_bounds = array<i64: 1>, scalar_prefetch = 0 : i64, scratch_operands = 0 : i64, tpu.core_type = #tpu.core_type<tc>, window_params = [{pipeline_mode = #tpu.pipeline_mode<synchronous>, transform_indices = @transform_0, window_bounds = array<i64: 8, 32>}, {pipeline_mode = #tpu.pipeline_mode<synchronous>, transform_indices = @transform_1, window_bounds = array<i64: 8, 1>}, {pipeline_mode = #tpu.pipeline_mode<synchronous>, transform_indices = @transform_2, window_bounds = array<i64: 1, 1>}]} {
    %c0 = arith.constant 0 : index
    %c0_0 = arith.constant 0 : index
    %0 = vector.load %arg1[%c0, %c0_0] : memref<8x32xf32, #tpu.memory_space<vmem>>, vector<8x32xf32>
    %c0_1 = arith.constant 0 : index
    %c0_2 = arith.constant 0 : index
    %1 = vector.load %arg2[%c0_1, %c0_2] : memref<8x1xi32, #tpu.memory_space<vmem>>, vector<8x1xi32>
    %2 = tpu.iota {dimensions = array<i32: 1>} : vector<8x32xi32>
    %3 = vector.broadcast %1 : vector<8x1xi32> to vector<8x32xi32>
    %4 = arith.cmpi eq, %2, %3 : vector<8x32xi32>
    %cst = arith.constant 0.000000e+00 : f32
    %cst_3 = arith.constant 1.000000e+00 : f32
    %5 = vector.broadcast %cst : f32 to vector<8x32xf32>
    %6 = vector.broadcast %cst_3 : f32 to vector<8x32xf32>
    %7 = arith.select %4, %5, %6 : vector<8x32xi1>, vector<8x32xf32>
    %8 = arith.addf %0, %7 : vector<8x32xf32>
    %cst_4 = arith.constant 0.000000e+00 : f32
    %9 = vector.broadcast %cst_4 : f32 to vector<8x32xf32>
    %10 = arith.select %4, %0, %9 : vector<8x32xi1>, vector<8x32xf32>
    %cst_5 = arith.constant dense<0.000000e+00> : vector<8xf32>
    %11 = vector.multi_reduction <add>, %10, %cst_5 [1] : vector<8x32xf32> to vector<8xf32>
    %12 = vector.shape_cast %11 : vector<8xf32> to vector<8x1xf32>
    %cst_6 = arith.constant 1.000000e+00 : f32
    %13 = vector.broadcast %cst_6 : f32 to vector<8x1xf32>
    %cst_7 = arith.constant dense<0.000000e+00> : vector<8x8xf32>
    %14 = tpu.matmul %13, %12, %cst_7 {dimension_numbers = #tpu.dot_dimension_numbers<[1], [1], [0], [0], [0, 0, 1, 0], [], []>} : vector<8x1xf32>, vector<8x1xf32>, vector<8x8xf32> -> vector<8x8xf32>
    %cst_8 = arith.constant 0.000000e+00 : f32
    %15 = vector.broadcast %cst_8 : f32 to vector<8x8xf32>
    %cst_9 = arith.constant dense<0xFF800000> : vector<8xf32>
    %16 = vector.multi_reduction <maximumf>, %8, %cst_9 [1] : vector<8x32xf32> to vector<8xf32>
    %17 = vector.shape_cast %16 : vector<8xf32> to vector<8x1xf32>
    %18 = vector.broadcast %17 : vector<8x1xf32> to vector<8x8xf32>
    %19 = arith.subf %18, %14 : vector<8x8xf32>
    %cst_10 = arith.constant 0.000000e+00 : f32
    %20 = vector.broadcast %cst_10 : f32 to vector<8x8xf32>
    %21 = arith.maximumf %19, %20 : vector<8x8xf32>
    %22 = arith.addf %15, %21 : vector<8x8xf32>
    %23 = vector.broadcast %17 : vector<8x1xf32> to vector<8x32xf32>
    %24 = arith.cmpf oeq, %8, %23 : vector<8x32xf32>
    %c32_i32 = arith.constant 32 : i32
    %25 = vector.broadcast %c32_i32 : i32 to vector<8x32xi32>
    %26 = arith.select %24, %2, %25 : vector<8x32xi1>, vector<8x32xi32>
    %cst_11 = arith.constant dense<2147483647> : vector<8xi32>
    %27 = vector.multi_reduction <minsi>, %26, %cst_11 [1] : vector<8x32xi32> to vector<8xi32>
    %28 = vector.shape_cast %27 : vector<8xi32> to vector<8x1xi32>
    %29 = vector.broadcast %28 : vector<8x1xi32> to vector<8x32xi32>
    %30 = arith.cmpi eq, %2, %29 : vector<8x32xi32>
    %cst_12 = arith.constant 0xFF800000 : f32
    %31 = vector.broadcast %cst_12 : f32 to vector<8x32xf32>
    %32 = arith.select %30, %31, %8 : vector<8x32xi1>, vector<8x32xf32>
    %cst_13 = arith.constant dense<0xFF800000> : vector<8xf32>
    %33 = vector.multi_reduction <maximumf>, %32, %cst_13 [1] : vector<8x32xf32> to vector<8xf32>
    %34 = vector.shape_cast %33 : vector<8xf32> to vector<8x1xf32>
    %35 = vector.broadcast %34 : vector<8x1xf32> to vector<8x8xf32>
    %36 = arith.subf %35, %14 : vector<8x8xf32>
    %cst_14 = arith.constant 0.000000e+00 : f32
    %37 = vector.broadcast %cst_14 : f32 to vector<8x8xf32>
    %38 = arith.maximumf %36, %37 : vector<8x8xf32>
    %39 = arith.addf %22, %38 : vector<8x8xf32>
    %40 = vector.broadcast %34 : vector<8x1xf32> to vector<8x32xf32>
    %41 = arith.cmpf oeq, %32, %40 : vector<8x32xf32>
    %c32_i32_15 = arith.constant 32 : i32
    %42 = vector.broadcast %c32_i32_15 : i32 to vector<8x32xi32>
    %43 = arith.select %41, %2, %42 : vector<8x32xi1>, vector<8x32xi32>
    %cst_16 = arith.constant dense<2147483647> : vector<8xi32>
    %44 = vector.multi_reduction <minsi>, %43, %cst_16 [1] : vector<8x32xi32> to vector<8xi32>
    %45 = vector.shape_cast %44 : vector<8xi32> to vector<8x1xi32>
    %46 = vector.broadcast %45 : vector<8x1xi32> to vector<8x32xi32>
    %47 = arith.cmpi eq, %2, %46 : vector<8x32xi32>
    %cst_17 = arith.constant 0xFF800000 : f32
    %48 = vector.broadcast %cst_17 : f32 to vector<8x32xf32>
    %49 = arith.select %47, %48, %32 : vector<8x32xi1>, vector<8x32xf32>
    %cst_18 = arith.constant dense<0xFF800000> : vector<8xf32>
    %50 = vector.multi_reduction <maximumf>, %49, %cst_18 [1] : vector<8x32xf32> to vector<8xf32>
    %51 = vector.shape_cast %50 : vector<8xf32> to vector<8x1xf32>
    %52 = vector.broadcast %51 : vector<8x1xf32> to vector<8x8xf32>
    %53 = arith.subf %52, %14 : vector<8x8xf32>
    %cst_19 = arith.constant 0.000000e+00 : f32
    %54 = vector.broadcast %cst_19 : f32 to vector<8x8xf32>
    %55 = arith.maximumf %53, %54 : vector<8x8xf32>
    %56 = arith.addf %39, %55 : vector<8x8xf32>
    %cst_20 = arith.constant dense<0.000000e+00> : vector<8xf32>
    %57 = vector.multi_reduction <add>, %56, %cst_20 [1] : vector<8x8xf32> to vector<8xf32>
    %58 = vector.shape_cast %57 : vector<8xf32> to vector<8x1xf32>
    %cst_21 = arith.constant dense<0.000000e+00> : vector<1xf32>
    %59 = vector.multi_reduction <add>, %58, %cst_21 [0] : vector<8x1xf32> to vector<1xf32>
    %60 = vector.shape_cast %59 : vector<1xf32> to vector<1x1xf32>
    %cst_22 = arith.constant 0.00520833349 : f32
    %61 = vector.broadcast %cst_22 : f32 to vector<1x1xf32>
    %62 = arith.mulf %60, %61 : vector<1x1xf32>
    %c0_23 = arith.constant 0 : index
    %c0_24 = arith.constant 0 : index
    %63 = vector.load %arg3[%c0_23, %c0_24] : memref<1x1xf32, #tpu.memory_space<vmem>>, vector<1x1xf32>
    tpu.vector_store %arg3[%c0_23, %c0_24], %62 {strides = array<i32>} : memref<1x1xf32, #tpu.memory_space<vmem>>, vector<1x1xf32>,
    return
  }
  func.func @transform_0(%arg0: i32) -> (i32, i32) {
    %c0_i32 = arith.constant 0 : i32
    %c0_i32_0 = arith.constant 0 : i32
    %c0_i32_1 = arith.constant 0 : i32
    return %c0_i32, %c0_i32_0 : i32, i32
  }
  func.func @transform_1(%arg0: i32) -> (i32, i32) {
    %c0_i32 = arith.constant 0 : i32
    %c0_i32_0 = arith.constant 0 : i32
    %c0_i32_1 = arith.constant 0 : i32
    return %c0_i32, %c0_i32_0 : i32, i32
  }
  func.func @transform_2(%arg0: i32) -> (i32, i32) {
    %c0_i32 = arith.constant 0 : i32
    %c0_i32_0 = arith.constant 0 : i32
    %c0_i32_1 = arith.constant 0 : i32
    return %c0_i32, %c0_i32_0 : i32, i32
  }
}

</mosaic_0001>

<llo_original>
// kernel: tpu_custom_call.1
$region0: #{tpu_custom_call.1}
  #allocation0 [shape = 'u32[]', space=smem, size = 0x4, offset = 0x4, fixed_abs, tag = 'smem constant byte address 0x4 - core index']
  #allocation1 [shape = 'u32[72,128]{1,0:T(1,128)}', space=vmem, size = 0x9000, scoped, tag = 'internal scratch']
  %s0 = inlined_call_operand.vmem [shape: f32[8,32], index: 0, kind: input, shape index: {}]
  %s1 = inlined_call_operand.vmem [shape: s32[8,1], index: 1, kind: input, shape index: {}]
  %s2 = inlined_call_operand.hbm [shape: f32[1,1], index: 2, kind: output, shape index: {}]
  %s3 = sld [smem:[#allocation0]]
  $region18: #{tpu_custom_call.1} parent=0
    _
  %s5 = ssub.s32 1, %s3
  %s6 = scalar_select 0, %s5, %s3
  $region1: #{tpu_custom_call.1} parent=0
    #allocation2 [shape = 'u8[512]{0}', space=vmem, size = 0x400, scoped, tag = 'output window, operand 0, single buffered']
    #allocation3 [shape = 's32[1]{0}', space=sflag, size = 0x4, scoped, tag = 'scoped memory for tpu_custom_call.1']
    %7 = vsyncpa [#allocation3], 0
    // Predicated region
    $region2: #{tpu_custom_call.1} parent=1 // pred_check
      _
    $region3: #{tpu_custom_call.1} parent=1 // pred_check_branch
      %9 = sbr.rel (0) target = $region5
    $region4: #{tpu_custom_call.1} parent=1 // pred_region
      _
    $region5: #{tpu_custom_call.1} parent=1 // pred_fallthru
      _
    // Predicated region
    $region6: #{tpu_custom_call.1} parent=1 // pred_check
      _
    $region7: #{tpu_custom_call.1} parent=1 // pred_check_branch
      %11 = sbr.rel (0) target = $region9
    $region8: #{tpu_custom_call.1} parent=1 // pred_region
      _
    $region9: #{tpu_custom_call.1} parent=1 // pred_fallthru
      _
    %v12 = vld [vmem:[%s0] sm:$0xff]
    %v13 = vld [vmem:[%s1] sm:$0xff]
    %v14 = vlaneseq
    %v15 = vand.u32 %v14, 127
    %16 = vset.pattern.permute.xlu0 0
    %17 = vperm.xlu0 %16, %v13
    %v18 = vpop.permute.xlu0 %17
    %vm19 = vcmp.eq.s32.totalorder %v15, %v18
    %v20 = vsel %vm19, 0.0, 1.0
    %v21 = vadd.f32 %v12, %v20
    %v22 = vsel %vm19, %v12, 0.0
    %vm23 = vcmask 261120
    %v24 = vsel %vm23, %v22, 0.0
    %25 = vadd.xlane.f32.xlu0 %v24
    %v26 = vpop.xlane.xlu0 %25
    %vm27 = vcmask 7168
    %v29 = vsel %vm27, 1.0, 0
    %v32 = vsel %vm27, %v26, 0
    %34 = vmatpush.xpose.msra.mxu0 0.0
    %35 = vmatpush.xpose.msra.mxu0 0.0
    %36 = vmatpush.xpose.msra.mxu0 0.0
    %37 = vmatpush.xpose.msra.mxu0 0.0
    %38 = vmatpush.xpose.msra.mxu0 0.0
    %39 = vmatpush.xpose.msra.mxu0 0.0
    %40 = vmatpush.xpose.msra.mxu0 0.0
    %41 = vmatpush.xpose.msra.mxu0 0.0
    %42 = vmatpush.xpose.msra.mxu0 0.0
    %43 = vmatpush.xpose.msra.mxu0 0.0
    %44 = vmatpush.xpose.msra.mxu0 0.0
    %45 = vmatpush.xpose.msra.mxu0 0.0
    %46 = vmatpush.xpose.msra.mxu0 0.0
    %47 = vmatpush.xpose.msra.mxu0 0.0
    %48 = vmatpush.xpose.msra.mxu0 0.0
    %49 = vmatpush.xpose.msra.mxu0 %v32
    %50 = vmatmul.f32.gmra.mxu0 %v29
    %v51 = vpop.f32.mrf.mxu0
    %v52 = vadd.f32 0.0, %v51
    %53 = vdwg.mxu0
    %v54 = vsel %vm23, %v21, -inf
    %55 = vmax.xlane.f32.xlu0 %v54
    %v56 = vpop.xlane.xlu0 %55
    %v57 = vsub.f32 %v56, %v52
    %v58 = vmax.f32 %v57, 0.0
    %v59 = vadd.f32 %v58, 0.0
    %vm60 = vcmp.eq.f32.partialorder %v21, %v56
    %v61 = vsel %vm60, %v15, 32
    %v62 = vsel %vm23, %v61, 2147483647
    %v63 = vand.u32 %v62, 65535
    %v64 = vshra.s32 %v62, 16
    %v65 = vcvt.s32.f32 %v63
    %v66 = vcvt.s32.f32 %v64
    %67 = vmin.xlane.f32.xlu0 %v66
    %v68 = vpop.xlane.xlu0 %67
    %vm69 = vcmp.eq.f32.partialorder %v66, %v68
    %v70 = vsel %vm69, %v65, inf
    %71 = vmin.xlane.f32.xlu0 %v70
    %v72 = vpop.xlane.xlu0 %71
    %v73 = vcvt.f32.s32 %v72
    %v74 = vcvt.f32.s32 %v68
    %v75 = vshll.u32 %v74, 16
    %v76 = vadd.s32 %v75, %v73
    %vm77 = vcmp.eq.s32.totalorder %v15, %v76
    %v78 = vsel %vm77, -inf, %v21
    %v79 = vsel %vm23, %v78, -inf
    %80 = vmax.xlane.f32.xlu0 %v79
    %v81 = vpop.xlane.xlu0 %80
    %v82 = vsub.f32 %v81, %v52
    %v83 = vmax.f32 %v82, 0.0
    %v84 = vadd.f32 %v59, %v83
    %vm85 = vcmp.eq.f32.partialorder %v78, %v81
    %v86 = vsel %vm85, %v15, 32
    %v87 = vsel %vm23, %v86, 2147483647
    %v88 = vand.u32 %v87, 65535
    %v89 = vshra.s32 %v87, 16
    %v90 = vcvt.s32.f32 %v88
    %v91 = vcvt.s32.f32 %v89
    %92 = vmin.xlane.f32.xlu0 %v91
    %v93 = vpop.xlane.xlu0 %92
    %vm94 = vcmp.eq.f32.partialorder %v91, %v93
    %v95 = vsel %vm94, %v90, inf
    %96 = vmin.xlane.f32.xlu0 %v95
    %v97 = vpop.xlane.xlu0 %96
    %v98 = vcvt.f32.s32 %v97
    %v99 = vcvt.f32.s32 %v93
    %v100 = vshll.u32 %v99, 16
    %v101 = vadd.s32 %v100, %v98
    %vm102 = vcmp.eq.s32.totalorder %v15, %v101
    %v103 = vsel %vm102, -inf, %v78
    %v104 = vsel %vm23, %v103, -inf
    %105 = vmax.xlane.f32.xlu0 %v104
    %v106 = vpop.xlane.xlu0 %105
    %v107 = vsub.f32 %v106, %v52
    %v108 = vmax.f32 %v107, 0.0
    %v109 = vadd.f32 %v84, %v108
    %vm110 = vcmask 64512
    %v111 = vsel %vm110, %v109, 0.0
    %112 = vadd.xlane.f32.xlu0 %v111
    %v113 = vpop.xlane.xlu0 %112
    %v114 = vrot.slane %v113, 4
    %v115 = vadd.f32 %v113, %v114
    %v116 = vrot.slane %v115, 2
    %v117 = vadd.f32 %v115, %v116
    %v118 = vrot.slane %v117, 1
    %v119 = vadd.f32 %v117, %v118
    %v120 = vmul.f32 %v119, 0.0052083335
    %vm121 = vcmask 0
    %122 = vst.msk [vmem:[#allocation2] sm:$0x1] %vm121, %v120
    // Predicated region
    $region10: #{tpu_custom_call.1} parent=1 // pred_check
      _
    $region11: #{tpu_custom_call.1} parent=1 // pred_check_branch
      %124 = sbr.rel (0) target = $region13
    $region12: #{tpu_custom_call.1} parent=1 // pred_region
      %126 = vsyncadd [#allocation3], 0
      %s128 = sshll.u32 [#allocation2], 4
      %s129 = int_to_ptr.vmem [resolvable:$true] %s128
      %s130 = sshll.u32 %s2, 4
      %s131 = int_to_ptr.hbm [resolvable:$true] %s130
      %133 = dma.vmem_to_hbm [thread:$0]  %s129, 16, %s131, [#allocation3]
    $region13: #{tpu_custom_call.1} parent=1 // pred_fallthru
      _
    // Predicated region
    $region14: #{tpu_custom_call.1} parent=1 // pred_check
      _
    $region15: #{tpu_custom_call.1} parent=1 // pred_check_branch
      %135 = sbr.rel (0) target = $region17
    $region16: #{tpu_custom_call.1} parent=1 // pred_region
      %137 = dma.done [#allocation3], 16
    $region17: #{tpu_custom_call.1} parent=1 // pred_fallthru
      _
    %138 = vsyncpa [#allocation3], 1

</llo_original>
